<compile_context>
chip_gen: v7x
topology: tpu7x:2x2x1
jax: 0.10.0
libtpu: 0.0.40
codegen_flags: <defaults>
</compile_context>

<pallas_src>
import math

import jax
import jax.numpy as jnp
import numpy as np
from jax import lax
from jax.experimental import pallas as pl
from jax.experimental.pallas import tpu as pltpu

EPS = 1e-5


def _make_kernel(k1, dil1, pad_left, c_mid_p, T, blk):
    def kernel(xs_ref, wb_ref, bb_ref, w1_ref, b1_ref, o_ref):
        # --- fused tcn0 (both stride-2 phases) + k=1 downsample: one MXU push
        y = jnp.dot(wb_ref[...], xs_ref[...],
                    preferred_element_type=jnp.float32)
        y = jnp.maximum(y + bb_ref[...], 0.0)         # relu0 / downsamplerelu (f32)
        x1 = y[:c_mid_p, :]                           # (c_mid_p, blk) f32
        res = y[c_mid_p:, :]                          # (c_out,   blk) f32

        # --- in-kernel per-tap boundary masks (no mask DMA stream) ----------
        # blk is a multiple of T by construction, so lane % T is the
        # within-sample time index (local phase == global phase).
        lane = lax.broadcasted_iota(jnp.int32, (1, blk), 1)
        if (T & (T - 1)) == 0:
            t_phase = lane & (T - 1)
        else:
            t_phase = lane % T

        # --- tcn1 dilated 'same' conv: XLU lane rolls + masks, all taps ------
        # stacked on the contraction axis -> a single MXU dot.
        taps = []
        for j in range(k1):                           # static tap loop
            off = j * dil1 - pad_left
            if off == 0:
                taps.append(x1)
            else:
                # want tap[:, l] = x1[:, l + off]; roll is cyclic, the mask
                # zeroes wrap-around / cross-sample / pad-lane leakage.
                s = pltpu.roll(x1, shift=(-off) % blk, axis=1)
                valid = (t_phase + off >= 0) & (t_phase + off < T)
                taps.append(jnp.where(valid, s, 0.0))
        tap_stack = jnp.concatenate(taps, axis=0)     # (k1*c_mid_p, blk) f32
        x2 = jnp.dot(w1_ref[...], tap_stack.astype(w1_ref.dtype),
                     preferred_element_type=jnp.float32) + b1_ref[...]

        # --- residual add + final ReLU ---------------------------------------
        o_ref[...] = jnp.maximum(x2 + res, 0.0)

    return kernel


def _fold_bn(w, b, gamma, beta, mean, var):
    """Fold inference-mode BatchNorm into conv weight (Cout,Cin,k) and bias."""
    scale = gamma / jnp.sqrt(var + EPS)
    return w * scale[:, None, None], (b - mean) * scale + beta


def tempblock2_forward(x, p, *, compute_dtype=jnp.bfloat16, lane_budget=16384):
    N, c_in, L = x.shape
    k0 = p['w0'].shape[2]
    k1 = p['w1'].shape[2]
    dil1 = int(p['dil1'])
    c_mid = p['w0'].shape[0]
    c_out = p['w1'].shape[0]
    assert k0 == 2 and L % 2 == 0, \
        "as written, the PyTorch forward only matches lengths when k0 == 2"
    T = L // 2

    # ---- fold BN (inference mode) into each conv's weights/bias (exact) ----
    w0f, b0f = _fold_bn(p['w0'], p['b0'], p['g0'], p['beta0'], p['m0'], p['v0'])
    w1f, b1f = _fold_bn(p['w1'], p['b1'], p['g1'], p['beta1'], p['m1'], p['v1'])
    wdf, bdf = _fold_bn(p['wd'], p['bd'], p['gd'], p['betad'], p['md'], p['vd'])

    # Pad c_mid up to a sublane multiple so the row-split of the fused matmul
    # result lands on an (8,128)-tile boundary.
    c_mid_p = ((c_mid + 7) // 8) * 8

    # ---- fused tcn0(2 phases) + downsample weight: (c_mid_p+c_out, 2*c_in) --
    # Column order = c*2 + phase matches the NATURAL interleaved layout of x,
    # so the wrapper needs only one relayout pass on x (bf16 cast fused in).
    top = w0f.reshape(c_mid, k0 * c_in)                            # col = c*2 + p
    top = jnp.pad(top, ((0, c_mid_p - c_mid), (0, 0)))
    wd = wdf[:, :, 0]                                              # (c_out, c_in)
    bot = jnp.stack([wd, jnp.zeros_like(wd)], axis=2).reshape(c_out, 2 * c_in)
    w_big = jnp.concatenate([top, bot], axis=0).astype(compute_dtype)
    b_big = jnp.concatenate([jnp.pad(b0f, (0, c_mid_p - c_mid)), bdf]
                            )[:, None].astype(jnp.float32)

    # ---- tcn1 folded weights, tap-major flattened on the contraction axis ---
    w1p = jnp.pad(w1f, ((0, 0), (0, c_mid_p - c_mid), (0, 0)))     # (c_out,c_mid_p,k1)
    w1_flat = jnp.transpose(w1p, (0, 2, 1)).reshape(
        c_out, k1 * c_mid_p).astype(compute_dtype)                 # idx = j*c_mid_p + c
    b1c = b1f[:, None].astype(jnp.float32)

    # ---- lane layout: lane = n*T + t, padded to a multiple of lcm(T, 128) ---
    unit = T * 128 // math.gcd(T, 128)     # keeps samples intact & 128-aligned
    L_real = N * T
    L_pad = ((L_real + unit - 1) // unit) * unit
    n_units = L_pad // unit

    # Largest divisor-aligned block under lane_budget; if that would leave a
    # single grid step, prefer a still-large (>=2048 lane) split so v7x can
    # shard the block axis across both TensorCores.
    cands = sorted(g for g in range(1, n_units + 1)
                   if n_units % g == 0 and g * unit <= max(lane_budget, unit))
    g_best = cands[-1]
    if n_units // g_best < 2:
        alt = [g for g in cands if n_units // g >= 2 and g * unit >= 2048]
        if alt:
            g_best = alt[-1]
    blk = g_best * unit
    grid_n = L_pad // blk

    # Deinterleave stride-2 phases: row = c*2 + phase, lane = n*T + t.
    xs = jnp.transpose(x.reshape(N, c_in, T, 2), (1, 3, 0, 2)
                       ).reshape(2 * c_in, L_real).astype(compute_dtype)
    xs = jnp.pad(xs, ((0, 0), (0, L_pad - L_real)))

    pad_total = dil1 * (k1 - 1)
    pad_left = pad_total // 2              # PyTorch 'same' split (extra on right)

    kernel = _make_kernel(k1, dil1, pad_left, c_mid_p, T, blk)

    out = pl.pallas_call(
        kernel,
        out_shape=jax.ShapeDtypeStruct((c_out, L_pad), jnp.float32),
        grid=(grid_n,),
        in_specs=[
            pl.BlockSpec((2 * c_in, blk), lambda g: (0, g)),              # x phases
            pl.BlockSpec((c_mid_p + c_out, 2 * c_in), lambda g: (0, 0)),  # W_big
            pl.BlockSpec((c_mid_p + c_out, 1), lambda g: (0, 0)),         # b_big
            pl.BlockSpec((c_out, k1 * c_mid_p), lambda g: (0, 0)),        # W1 (flat)
            pl.BlockSpec((c_out, 1), lambda g: (0, 0)),                   # b1
        ],
        out_specs=pl.BlockSpec((c_out, blk), lambda g: (0, g)),
        compiler_params=pltpu.CompilerParams(
            # independent blocks -> shard across TCs; raise scoped VMEM so the
            # large-blk working set also fits v5e's 16 MiB default.
            dimension_semantics=("parallel",),
            vmem_limit_bytes=48 * 1024 * 1024),
    )(xs, w_big, b_big, w1_flat, b1c)

    # drop lane padding, restore NCL layout
    out = out[:, :L_real].reshape(c_out, N, T)
    return jnp.transpose(out, (1, 0, 2))


def ref_forward(x, p):
    """Pure-JAX reference mirroring the PyTorch forward (BN in eval mode)."""
    dn = ('NCH', 'OIH', 'NCH')

    def bn(y, g, b, m, v):
        return ((y - m[None, :, None]) / jnp.sqrt(v[None, :, None] + EPS)
                * g[None, :, None] + b[None, :, None])

    y0 = lax.conv_general_dilated(x, p['w0'], (2,), [(0, 0)],
                                  dimension_numbers=dn) + p['b0'][None, :, None]
    x1 = jnp.maximum(bn(y0, p['g0'], p['beta0'], p['m0'], p['v0']), 0.0)

    k1 = p['w1'].shape[2]
    pad_total = p['dil1'] * (k1 - 1)
    pad_l = pad_total // 2
    y1 = lax.conv_general_dilated(x1, p['w1'], (1,),
                                  [(pad_l, pad_total - pad_l)],
                                  rhs_dilation=(p['dil1'],),
                                  dimension_numbers=dn) + p['b1'][None, :, None]
    x2 = bn(y1, p['g1'], p['beta1'], p['m1'], p['v1'])

    r = lax.conv_general_dilated(x, p['wd'], (2,), [(0, 0)],
                                 dimension_numbers=dn) + p['bd'][None, :, None]
    r = jnp.maximum(bn(r, p['gd'], p['betad'], p['md'], p['vd']), 0.0)
    return jnp.maximum(x2 + r, 0.0)


if __name__ == "__main__":
    # Module config (small, consistent with TempBlock2 ctor):
    #   ch_in=(4, 8), ch_out=(8, 8), k_size=(2, 3), dil=(1, 2), use_bias=True
    c_in0, c_out0 = 4, 8
    c_in1, c_out1 = 8, 8
    k0, k1 = 2, 3
    dil1 = 2
    N, L = 2, 16

    key = jax.random.PRNGKey(0)
    ks = jax.random.split(key, 20)

    def bn_params(k, c):
        k1_, k2_, k3_, k4_ = jax.random.split(k, 4)
        g = 1.0 + 0.1 * jax.random.normal(k1_, (c,), jnp.float32)
        beta = 0.1 * jax.random.normal(k2_, (c,), jnp.float32)
        mean = 0.1 * jax.random.normal(k3_, (c,), jnp.float32)
        var = 0.5 + jnp.abs(jax.random.normal(k4_, (c,), jnp.float32)) * 0.5
        return g, beta, mean, var

    g0, beta0, m0, v0 = bn_params(ks[10], c_out0)
    g1, beta1, m1, v1 = bn_params(ks[11], c_out1)
    gd, betad, md, vd = bn_params(ks[12], c_out1)

    params = {
        'w0': jax.random.normal(ks[0], (c_out0, c_in0, k0), jnp.float32) * 0.5,
        'b0': jax.random.normal(ks[1], (c_out0,), jnp.float32) * 0.1,
        'w1': jax.random.normal(ks[2], (c_out1, c_in1, k1), jnp.float32) * 0.5,
        'b1': jax.random.normal(ks[3], (c_out1,), jnp.float32) * 0.1,
        'wd': jax.random.normal(ks[4], (c_out1, c_in0, 1), jnp.float32) * 0.5,
        'bd': jax.random.normal(ks[5], (c_out1,), jnp.float32) * 0.1,
        'g0': g0, 'beta0': beta0, 'm0': m0, 'v0': v0,
        'g1': g1, 'beta1': beta1, 'm1': m1, 'v1': v1,
        'gd': gd, 'betad': betad, 'md': md, 'vd': vd,
        'dil1': dil1,
    }

    x = jax.random.normal(ks[6], (N, c_in0, L), jnp.float32)

    ref = jax.block_until_ready(ref_forward(x, params))

    # exact f32 path: validates the kernel math against the reference tightly
    out_f32 = jax.block_until_ready(
        tempblock2_forward(x, params, compute_dtype=jnp.float32))
    assert out_f32.shape == ref.shape == (N, c_out1, L // 2)
    assert np.allclose(np.asarray(out_f32), np.asarray(ref),
                       atol=1e-4, rtol=1e-3), \
        "Pallas kernel (f32) mismatch vs JAX reference"

    # production bf16-operand path (f32 accumulate / post-dot math); the looser
    # tolerance only reflects bf16 input/weight quantization.
    out_bf16 = jax.block_until_ready(tempblock2_forward(x, params))
    assert out_bf16.shape == ref.shape
    assert np.allclose(np.asarray(out_bf16), np.asarray(ref),
                       atol=5e-2, rtol=5e-2), \
        "Pallas kernel (bf16 operands) mismatch vs JAX reference"

    print("KERNEL_OK")
</pallas_src>

<mosaic_0001>
module attributes {stable_mosaic.version = 11 : i64} {
  func.func @kernel(%arg0: i32, %arg1: memref<8x128xf32, #tpu.memory_space<vmem>>, %arg2: memref<16x8xf32, #tpu.memory_space<vmem>>, %arg3: memref<16x1xf32, #tpu.memory_space<vmem>>, %arg4: memref<8x24xf32, #tpu.memory_space<vmem>>, %arg5: memref<8x1xf32, #tpu.memory_space<vmem>>, %arg6: memref<8x128xf32, #tpu.memory_space<vmem>>) attributes {dimension_semantics = [#tpu.dimension_semantics<parallel>], iteration_bounds = array<i64: 1>, scalar_prefetch = 0 : i64, scratch_operands = 0 : i64, tpu.core_type = #tpu.core_type<tc>, window_params = [{transform_indices = @transform_0, window_bounds = array<i64: 8, 128>}, {pipeline_mode = #tpu.pipeline_mode<synchronous>, transform_indices = @transform_1, window_bounds = array<i64: 16, 8>}, {pipeline_mode = #tpu.pipeline_mode<synchronous>, transform_indices = @transform_2, window_bounds = array<i64: 16, 1>}, {pipeline_mode = #tpu.pipeline_mode<synchronous>, transform_indices = @transform_3, window_bounds = array<i64: 8, 24>}, {pipeline_mode = #tpu.pipeline_mode<synchronous>, transform_indices = @transform_4, window_bounds = array<i64: 8, 1>}, {transform_indices = @transform_5, window_bounds = array<i64: 8, 128>}]} {
    %c0 = arith.constant 0 : index
    %c0_0 = arith.constant 0 : index
    %0 = vector.load %arg2[%c0, %c0_0] : memref<16x8xf32, #tpu.memory_space<vmem>>, vector<16x8xf32>
    %c0_1 = arith.constant 0 : index
    %c0_2 = arith.constant 0 : index
    %1 = vector.load %arg1[%c0_1, %c0_2] : memref<8x128xf32, #tpu.memory_space<vmem>>, vector<8x128xf32>
    %cst = arith.constant dense<0.000000e+00> : vector<16x128xf32>
    %2 = tpu.matmul %0, %1, %cst {dimension_numbers = #tpu.dot_dimension_numbers<[1], [0], [0], [1], [0, 0, 1, 1], [], []>} : vector<16x8xf32>, vector<8x128xf32>, vector<16x128xf32> -> vector<16x128xf32>
    %c0_3 = arith.constant 0 : index
    %c0_4 = arith.constant 0 : index
    %3 = vector.load %arg3[%c0_3, %c0_4] : memref<16x1xf32, #tpu.memory_space<vmem>>, vector<16x1xf32>
    %4 = vector.broadcast %3 : vector<16x1xf32> to vector<16x128xf32>
    %5 = arith.addf %2, %4 : vector<16x128xf32>
    %cst_5 = arith.constant 0.000000e+00 : f32
    %6 = vector.broadcast %cst_5 : f32 to vector<16x128xf32>
    %7 = arith.maximumf %5, %6 : vector<16x128xf32>
    %8 = vector.extract_strided_slice %7 {offsets = [0, 0], sizes = [8, 128], strides = [1, 1]} : vector<16x128xf32> to vector<8x128xf32>
    %9 = vector.extract_strided_slice %7 {offsets = [8, 0], sizes = [8, 128], strides = [1, 1]} : vector<16x128xf32> to vector<8x128xf32>
    %10 = tpu.iota {dimensions = array<i32: 1>} : vector<1x128xi32>
    %c7_i32 = arith.constant 7 : i32
    %11 = vector.broadcast %c7_i32 : i32 to vector<1x128xi32>
    %12 = arith.andi %10, %11 : vector<1x128xi32>
    %c2_i32 = arith.constant 2 : i32
    %13 = tpu.dynamic_rotate %8 by %c2_i32 dim 1 : vector<8x128xf32>, i32 -> vector<8x128xf32>
    %c-2_i32 = arith.constant -2 : i32
    %14 = vector.broadcast %c-2_i32 : i32 to vector<1x128xi32>
    %15 = arith.addi %12, %14 : vector<1x128xi32>
    %c0_i32 = arith.constant 0 : i32
    %16 = vector.broadcast %c0_i32 : i32 to vector<1x128xi32>
    %17 = arith.cmpi sge, %15, %16 : vector<1x128xi32>
    %c-2_i32_6 = arith.constant -2 : i32
    %18 = vector.broadcast %c-2_i32_6 : i32 to vector<1x128xi32>
    %19 = arith.addi %12, %18 : vector<1x128xi32>
    %c8_i32 = arith.constant 8 : i32
    %20 = vector.broadcast %c8_i32 : i32 to vector<1x128xi32>
    %21 = arith.cmpi slt, %19, %20 : vector<1x128xi32>
    %22 = arith.andi %17, %21 : vector<1x128xi1>
    %cst_7 = arith.constant 0.000000e+00 : f32
    %23 = vector.shape_cast %22 : vector<1x128xi1> to vector<1x128xi1>
    %24 = vector.broadcast %23 : vector<1x128xi1> to vector<8x128xi1>
    %25 = vector.broadcast %cst_7 : f32 to vector<8x128xf32>
    %26 = arith.select %24, %13, %25 : vector<8x128xi1>, vector<8x128xf32>
    %c126_i32 = arith.constant 126 : i32
    %27 = tpu.dynamic_rotate %8 by %c126_i32 dim 1 : vector<8x128xf32>, i32 -> vector<8x128xf32>
    %c2_i32_8 = arith.constant 2 : i32
    %28 = vector.broadcast %c2_i32_8 : i32 to vector<1x128xi32>
    %29 = arith.addi %12, %28 : vector<1x128xi32>
    %c0_i32_9 = arith.constant 0 : i32
    %30 = vector.broadcast %c0_i32_9 : i32 to vector<1x128xi32>
    %31 = arith.cmpi sge, %29, %30 : vector<1x128xi32>
    %c2_i32_10 = arith.constant 2 : i32
    %32 = vector.broadcast %c2_i32_10 : i32 to vector<1x128xi32>
    %33 = arith.addi %12, %32 : vector<1x128xi32>
    %c8_i32_11 = arith.constant 8 : i32
    %34 = vector.broadcast %c8_i32_11 : i32 to vector<1x128xi32>
    %35 = arith.cmpi slt, %33, %34 : vector<1x128xi32>
    %36 = arith.andi %31, %35 : vector<1x128xi1>
    %cst_12 = arith.constant 0.000000e+00 : f32
    %37 = vector.shape_cast %36 : vector<1x128xi1> to vector<1x128xi1>
    %38 = vector.broadcast %37 : vector<1x128xi1> to vector<8x128xi1>
    %39 = vector.broadcast %cst_12 : f32 to vector<8x128xf32>
    %40 = arith.select %38, %27, %39 : vector<8x128xi1>, vector<8x128xf32>
    %41 = tpu.concatenate %26, %8, %40 in 0 : vector<8x128xf32>, vector<8x128xf32>, vector<8x128xf32> -> vector<24x128xf32>
    %c0_13 = arith.constant 0 : index
    %c0_14 = arith.constant 0 : index
    %42 = vector.load %arg4[%c0_13, %c0_14] : memref<8x24xf32, #tpu.memory_space<vmem>>, vector<8x24xf32>
    %cst_15 = arith.constant dense<0.000000e+00> : vector<8x128xf32>
    %43 = tpu.matmul %42, %41, %cst_15 {dimension_numbers = #tpu.dot_dimension_numbers<[1], [0], [0], [1], [0, 0, 1, 1], [], []>} : vector<8x24xf32>, vector<24x128xf32>, vector<8x128xf32> -> vector<8x128xf32>
    %c0_16 = arith.constant 0 : index
    %c0_17 = arith.constant 0 : index
    %44 = vector.load %arg5[%c0_16, %c0_17] : memref<8x1xf32, #tpu.memory_space<vmem>>, vector<8x1xf32>
    %45 = vector.broadcast %44 : vector<8x1xf32> to vector<8x128xf32>
    %46 = arith.addf %43, %45 : vector<8x128xf32>
    %47 = arith.addf %46, %9 : vector<8x128xf32>
    %cst_18 = arith.constant 0.000000e+00 : f32
    %48 = vector.broadcast %cst_18 : f32 to vector<8x128xf32>
    %49 = arith.maximumf %47, %48 : vector<8x128xf32>
    %c0_19 = arith.constant 0 : index
    %c0_20 = arith.constant 0 : index
    %50 = vector.load %arg6[%c0_19, %c0_20] : memref<8x128xf32, #tpu.memory_space<vmem>>, vector<8x128xf32>
    tpu.vector_store %arg6[%c0_19, %c0_20], %49 {strides = array<i32>} : memref<8x128xf32, #tpu.memory_space<vmem>>, vector<8x128xf32>,
    return
  }
  func.func @transform_0(%arg0: i32) -> (i32, i32) {
    %c0_i32 = arith.constant 0 : i32
    %c0_i32_0 = arith.constant 0 : i32
    return %c0_i32, %arg0 : i32, i32
  }
  func.func @transform_1(%arg0: i32) -> (i32, i32) {
    %c0_i32 = arith.constant 0 : i32
    %c0_i32_0 = arith.constant 0 : i32
    %c0_i32_1 = arith.constant 0 : i32
    return %c0_i32, %c0_i32_0 : i32, i32
  }
  func.func @transform_2(%arg0: i32) -> (i32, i32) {
    %c0_i32 = arith.constant 0 : i32
    %c0_i32_0 = arith.constant 0 : i32
    %c0_i32_1 = arith.constant 0 : i32
    return %c0_i32, %c0_i32_0 : i32, i32
  }
  func.func @transform_3(%arg0: i32) -> (i32, i32) {
    %c0_i32 = arith.constant 0 : i32
    %c0_i32_0 = arith.constant 0 : i32
    %c0_i32_1 = arith.constant 0 : i32
    return %c0_i32, %c0_i32_0 : i32, i32
  }
  func.func @transform_4(%arg0: i32) -> (i32, i32) {
    %c0_i32 = arith.constant 0 : i32
    %c0_i32_0 = arith.constant 0 : i32
    %c0_i32_1 = arith.constant 0 : i32
    return %c0_i32, %c0_i32_0 : i32, i32
  }
  func.func @transform_5(%arg0: i32) -> (i32, i32) {
    %c0_i32 = arith.constant 0 : i32
    %c0_i32_0 = arith.constant 0 : i32
    return %c0_i32, %arg0 : i32, i32
  }
}

</mosaic_0001>

<llo_original>
// kernel: tpu_custom_call.1
$region0: #{tpu_custom_call.1}
  #allocation0 [shape = 'u32[]', space=smem, size = 0x4, offset = 0x4, fixed_abs, tag = 'smem constant byte address 0x4 - core index']
  #allocation1 [shape = 'u32[144,128]{1,0:T(1,128)}', space=vmem, size = 0x12000, scoped, tag = 'internal scratch']
  %s0 = inlined_call_operand.vmem [shape: f32[8,128], index: 0, kind: input, shape index: {}]
  %s1 = inlined_call_operand.vmem [shape: f32[16,8], index: 1, kind: input, shape index: {}]
  %s2 = inlined_call_operand.vmem [shape: f32[16,1], index: 2, kind: input, shape index: {}]
  %s3 = inlined_call_operand.vmem [shape: f32[8,24], index: 3, kind: input, shape index: {}]
  %s4 = inlined_call_operand.vmem [shape: f32[8,1], index: 4, kind: input, shape index: {}]
  %s5 = inlined_call_operand.hbm [shape: f32[8,128], index: 5, kind: output, shape index: {}]
  %s6 = sld [smem:[#allocation0]]
  $region30: #{tpu_custom_call.1} parent=0
    _
  %s8 = ssub.s32 1, %s6
  %s9 = scalar_select 0, %s8, %s6
  $region1: #{tpu_custom_call.1} parent=0
    #allocation2 [shape = 'u8[4096]{0}', space=vmem, size = 0x1000, scoped, tag = 'output window, operand 0, single buffered']
    #allocation3 [shape = 's32[1]{0}', space=sflag, size = 0x4, scoped, tag = 'scoped memory for tpu_custom_call.1']
    %10 = vsyncpa [#allocation3], 0
    // Predicated region
    $region2: #{tpu_custom_call.1} parent=1 // pred_check
      _
    $region3: #{tpu_custom_call.1} parent=1 // pred_check_branch
      %12 = sbr.rel (0) target = $region5
    $region4: #{tpu_custom_call.1} parent=1 // pred_region
      _
    $region5: #{tpu_custom_call.1} parent=1 // pred_fallthru
      _
    // Predicated region
    $region6: #{tpu_custom_call.1} parent=1 // pred_check
      _
    $region7: #{tpu_custom_call.1} parent=1 // pred_check_branch
      %14 = sbr.rel (0) target = $region9
    $region8: #{tpu_custom_call.1} parent=1 // pred_region
      _
    $region9: #{tpu_custom_call.1} parent=1 // pred_fallthru
      _
    // Predicated region
    $region10: #{tpu_custom_call.1} parent=1 // pred_check
      _
    $region11: #{tpu_custom_call.1} parent=1 // pred_check_branch
      %16 = sbr.rel (0) target = $region13
    $region12: #{tpu_custom_call.1} parent=1 // pred_region
      _
    $region13: #{tpu_custom_call.1} parent=1 // pred_fallthru
      _
    // Predicated region
    $region14: #{tpu_custom_call.1} parent=1 // pred_check
      _
    $region15: #{tpu_custom_call.1} parent=1 // pred_check_branch
      %18 = sbr.rel (0) target = $region17
    $region16: #{tpu_custom_call.1} parent=1 // pred_region
      _
    $region17: #{tpu_custom_call.1} parent=1 // pred_fallthru
      _
    // Predicated region
    $region18: #{tpu_custom_call.1} parent=1 // pred_check
      _
    $region19: #{tpu_custom_call.1} parent=1 // pred_check_branch
      %20 = sbr.rel (0) target = $region21
    $region20: #{tpu_custom_call.1} parent=1 // pred_region
      _
    $region21: #{tpu_custom_call.1} parent=1 // pred_fallthru
      _
    %v21 = vld [vmem:[%s1] sm:$0xff]
    %v22 = vld [vmem:[%s1 + $0x8] sm:$0xff]
    %v23 = vld [vmem:[%s0] sm:$0xff]
    %v24 = vld [vmem:[%s2] sm:$0xff]
    %v25 = vld [vmem:[%s2 + $0x8] sm:$0xff]
    %27 = vset.pattern.permute.xlu0 0
    %28 = vperm.xlu0 %27, %v24
    %v29 = vpop.permute.xlu0 %28
    %32 = vset.pattern.permute.xlu0 0
    %33 = vperm.xlu0 %32, %v25
    %v34 = vpop.permute.xlu0 %33
    %vm36 = vcmask 64512
    %v38 = vsel %vm36, %v21, 0
    %v41 = vsel %vm36, %v22, 0
    %43 = vmatprep.subr.mxu0 0.0
    %44 = vmatpush1.msra.mxu0 %v23
    %45 = vmatprep.subr.mxu0 0.0
    %46 = vmatpush1.msra.mxu0 0.0
    %47 = vmatprep.subr.mxu0 0.0
    %48 = vmatpush1.msra.mxu0 0.0
    %49 = vmatprep.subr.mxu0 0.0
    %50 = vmatpush1.msra.mxu0 0.0
    %51 = vmatprep.subr.mxu0 0.0
    %52 = vmatpush1.msra.mxu0 0.0
    %53 = vmatprep.subr.mxu0 0.0
    %54 = vmatpush1.msra.mxu0 0.0
    %55 = vmatprep.subr.mxu0 0.0
    %56 = vmatpush1.msra.mxu0 0.0
    %57 = vmatprep.subr.mxu0 0.0
    %58 = vmatpush1.msra.mxu0 0.0
    %59 = vmatprep.subr.mxu0 0.0
    %60 = vmatpush1.msra.mxu0 0.0
    %61 = vmatprep.subr.mxu0 0.0
    %62 = vmatpush1.msra.mxu0 0.0
    %63 = vmatprep.subr.mxu0 0.0
    %64 = vmatpush1.msra.mxu0 0.0
    %65 = vmatprep.subr.mxu0 0.0
    %66 = vmatpush1.msra.mxu0 0.0
    %67 = vmatprep.subr.mxu0 0.0
    %68 = vmatpush1.msra.mxu0 0.0
    %69 = vmatprep.subr.mxu0 0.0
    %70 = vmatpush1.msra.mxu0 0.0
    %71 = vmatprep.subr.mxu0 0.0
    %72 = vmatpush1.msra.mxu0 0.0
    %73 = vmatprep.subr.mxu0 0.0
    %74 = vmatpush1.msra.mxu0 0.0
    %75 = vmatprep.subr.mxu0 0.0
    %76 = vmatpush1.msra.mxu0 0.0
    %77 = vmatprep.subr.mxu0 0.0
    %78 = vmatpush1.msra.mxu0 0.0
    %79 = vmatprep.subr.mxu0 0.0
    %80 = vmatpush1.msra.mxu0 0.0
    %81 = vmatprep.subr.mxu0 0.0
    %82 = vmatpush1.msra.mxu0 0.0
    %83 = vmatprep.subr.mxu0 0.0
    %84 = vmatpush1.msra.mxu0 0.0
    %85 = vmatprep.subr.mxu0 0.0
    %86 = vmatpush1.msra.mxu0 0.0
    %87 = vmatprep.subr.mxu0 0.0
    %88 = vmatpush1.msra.mxu0 0.0
    %89 = vmatprep.subr.mxu0 0.0
    %90 = vmatpush1.msra.mxu0 0.0
    %91 = vmatprep.subr.mxu0 0.0
    %92 = vmatpush1.msra.mxu0 0.0
    %93 = vmatprep.subr.mxu0 0.0
    %94 = vmatpush1.msra.mxu0 0.0
    %95 = vmatprep.subr.mxu0 0.0
    %96 = vmatpush1.msra.mxu0 0.0
    %97 = vmatprep.subr.mxu0 0.0
    %98 = vmatpush1.msra.mxu0 0.0
    %99 = vmatprep.subr.mxu0 0.0
    %100 = vmatpush1.msra.mxu0 0.0
    %101 = vmatprep.subr.mxu0 0.0
    %102 = vmatpush1.msra.mxu0 0.0
    %103 = vmatprep.subr.mxu0 0.0
    %104 = vmatpush1.msra.mxu0 0.0
    %105 = vmatprep.subr.mxu0 0.0
    %106 = vmatpush1.msra.mxu0 0.0
    %107 = vmatprep.mubr.f32.mxu0 0.0
    %108 = vmatmul.mubr.f32.gmra.mrb[0].mxu0 %v38
    %v109 = vpop.f32.mrb[0].mxu0
    %v110 = vadd.f32 %v29, %v109
    %v111 = vpop.f32.mrb[0].mxu0
    %112 = vmatprep.mubr.f32.mxu0 0.0
    %113 = vmatmul.mubr.f32.gmra.mrb[0].mxu0 %v41
    %v114 = vpop.f32.mrb[0].mxu0
    %v115 = vadd.f32 %v34, %v114
    %v116 = vpop.f32.mrb[0].mxu0
    %117 = vdwg.mxu0
    %v118 = vmax.f32 %v110, 0.0
    %v119 = vmax.f32 %v115, 0.0
    %v120 = vlaneseq
    %v121 = vand.u32 %v120, 127
    %v122 = vand.u32 %v121, 7
    %123 = vrot.lane.b32.xlu0 %v118, 2
    %v124 = vpop.permute.xlu0 %123
    %v125 = vadd.s32 %v122, 4294967294
    %vm126 = vcmp.ge.s32.totalorder %v125, 0
    %vm127 = vcmp.lt.s32.totalorder %v125, 8
    %vm128 = vmand %vm126, %vm127
    %v129 = vsel %vm128, 1, 0
    %vm130 = vcmp.eq.s32.totalorder %v129, 1
    %v131 = vsel %vm130, %v124, 0.0
    %132 = vrot.lane.b32.xlu0 %v118, 126
    %v133 = vpop.permute.xlu0 %132
    %v134 = vadd.s32 %v122, 2
    %vm135 = vcmp.ge.s32.totalorder %v134, 0
    %vm136 = vcmp.lt.s32.totalorder %v134, 8
    %vm137 = vmand %vm135, %vm136
    %v138 = vsel %vm137, 1, 0
    %vm139 = vcmp.eq.s32.totalorder %v138, 1
    %v140 = vsel %vm139, %v133, 0.0
    %v141 = vld [vmem:[%s3] sm:$0xff]
    %v142 = vld [vmem:[%s4] sm:$0xff]
    %144 = vset.pattern.permute.xlu0 0
    %145 = vperm.xlu0 %144, %v142
    %v146 = vpop.permute.xlu0 %145
    %vm148 = vcmask 195584
    %v150 = vsel %vm148, %v141, 0
    %152 = vmatprep.subr.mxu0 0.0
    %153 = vmatpush1.msra.mxu0 %v131
    %154 = vmatprep.subr.mxu0 0.0
    %155 = vmatpush1.msra.mxu0 %v118
    %156 = vmatprep.subr.mxu0 0.0
    %157 = vmatpush1.msra.mxu0 %v140
    %158 = vmatprep.subr.mxu0 0.0
    %159 = vmatpush1.msra.mxu0 0.0
    %160 = vmatprep.subr.mxu0 0.0
    %161 = vmatpush1.msra.mxu0 0.0
    %162 = vmatprep.subr.mxu0 0.0
    %163 = vmatpush1.msra.mxu0 0.0
    %164 = vmatprep.subr.mxu0 0.0
    %165 = vmatpush1.msra.mxu0 0.0
    %166 = vmatprep.subr.mxu0 0.0
    %167 = vmatpush1.msra.mxu0 0.0
    %168 = vmatprep.subr.mxu0 0.0
    %169 = vmatpush1.msra.mxu0 0.0
    %170 = vmatprep.subr.mxu0 0.0
    %171 = vmatpush1.msra.mxu0 0.0
    %172 = vmatprep.subr.mxu0 0.0
    %173 = vmatpush1.msra.mxu0 0.0
    %174 = vmatprep.subr.mxu0 0.0
    %175 = vmatpush1.msra.mxu0 0.0
    %176 = vmatprep.subr.mxu0 0.0
    %177 = vmatpush1.msra.mxu0 0.0
    %178 = vmatprep.subr.mxu0 0.0
    %179 = vmatpush1.msra.mxu0 0.0
    %180 = vmatprep.subr.mxu0 0.0
    %181 = vmatpush1.msra.mxu0 0.0
    %182 = vmatprep.subr.mxu0 0.0
    %183 = vmatpush1.msra.mxu0 0.0
    %184 = vmatprep.subr.mxu0 0.0
    %185 = vmatpush1.msra.mxu0 0.0
    %186 = vmatprep.subr.mxu0 0.0
    %187 = vmatpush1.msra.mxu0 0.0
    %188 = vmatprep.subr.mxu0 0.0
    %189 = vmatpush1.msra.mxu0 0.0
    %190 = vmatprep.subr.mxu0 0.0
    %191 = vmatpush1.msra.mxu0 0.0
    %192 = vmatprep.subr.mxu0 0.0
    %193 = vmatpush1.msra.mxu0 0.0
    %194 = vmatprep.subr.mxu0 0.0
    %195 = vmatpush1.msra.mxu0 0.0
    %196 = vmatprep.subr.mxu0 0.0
    %197 = vmatpush1.msra.mxu0 0.0
    %198 = vmatprep.subr.mxu0 0.0
    %199 = vmatpush1.msra.mxu0 0.0
    %200 = vmatprep.subr.mxu0 0.0
    %201 = vmatpush1.msra.mxu0 0.0
    %202 = vmatprep.subr.mxu0 0.0
    %203 = vmatpush1.msra.mxu0 0.0
    %204 = vmatprep.subr.mxu0 0.0
    %205 = vmatpush1.msra.mxu0 0.0
    %206 = vmatprep.subr.mxu0 0.0
    %207 = vmatpush1.msra.mxu0 0.0
    %208 = vmatprep.subr.mxu0 0.0
    %209 = vmatpush1.msra.mxu0 0.0
    %210 = vmatprep.subr.mxu0 0.0
    %211 = vmatpush1.msra.mxu0 0.0
    %212 = vmatprep.subr.mxu0 0.0
    %213 = vmatpush1.msra.mxu0 0.0
    %214 = vmatprep.subr.mxu0 0.0
    %215 = vmatpush1.msra.mxu0 0.0
    %216 = vmatprep.mubr.f32.mxu0 0.0
    %217 = vmatmul.mubr.f32.gmra.mrb[0].mxu0 %v150
    %v218 = vpop.f32.mrb[0].mxu0
    %v219 = vadd.f32 %v146, %v218
    %v220 = vpop.f32.mrb[0].mxu0
    %221 = vdwg.mxu0
    %v222 = vadd.f32 %v219, %v119
    %v223 = vmax.f32 %v222, 0.0
    %224 = vst [vmem:[#allocation2] sm:$0xff] %v223
    // Predicated region
    $region22: #{tpu_custom_call.1} parent=1 // pred_check
      _
    $region23: #{tpu_custom_call.1} parent=1 // pred_check_branch
      %226 = sbr.rel (0) target = $region25
    $region24: #{tpu_custom_call.1} parent=1 // pred_region
      %s228 = ssub.s32 128, 128
      %229 = vsyncadd [#allocation3], %s228
      %s231 = sshll.u32 [#allocation2], 4
      %s232 = int_to_ptr.vmem [resolvable:$true] %s231
      %234 = dma.vmem_to_hbm [thread:$0]  %s232, 128, %s5, [#allocation3]
    $region25: #{tpu_custom_call.1} parent=1 // pred_fallthru
      _
    // Predicated region
    $region26: #{tpu_custom_call.1} parent=1 // pred_check
      _
    $region27: #{tpu_custom_call.1} parent=1 // pred_check_branch
      %236 = sbr.rel (0) target = $region29
    $region28: #{tpu_custom_call.1} parent=1 // pred_region
      %237 = dma.done [#allocation3], 128
    $region29: #{tpu_custom_call.1} parent=1 // pred_fallthru
      _
    %238 = vsyncpa [#allocation3], 1

</llo_original>
